<compile_context>
chip_gen: v6e
topology: v6e:2x2x1
jax: 0.10.0
libtpu: 0.0.40
codegen_flags: <defaults>
</compile_context>

<pallas_src>
import functools

import jax
import jax.numpy as jnp
from jax.experimental import pallas as pl
from jax.experimental.pallas import tpu as pltpu

_MIB = 1024 * 1024


def _moving_avg_kernel(x_ref, o_ref, *, kernel_size: int, pad: int, seq_len: int):
    """Stride-1 moving average over the time axis (axis -2) of the block.

    Works for rank-2 blocks (time, lanes) and rank-3 blocks (batch, time, lanes).
    Replicate padding of `pad` rows on both sides is folded in analytically; no padded
    copy of the input is materialized.
    """
    k = kernel_size
    L = seq_len
    T = L + 2 * pad - k + 1                      # number of stride-1 windows
    inv_k = jnp.float32(1.0 / k)
    out_dtype = o_ref.dtype

    x = x_ref[...]                               # (..., L, lanes)

    def f32(v):
        return v.astype(jnp.float32)

    if L >= k - 1:
        # ---- middle band: windows that never touch the padding ----
        # (For very large kernel_size a cumsum-difference would cap the add chain; typical
        #  decomposition kernels stay at/near the HBM roofline with the direct adds.)
        M = L - k + 1
        if M > 0:
            acc = f32(x[..., 0:M, :])            # j = 0 term: init from slice, no zeros pass
            for j in range(1, k):
                acc = acc + f32(x[..., j:j + M, :])
            o_ref[..., pad:pad + M, :] = (acc * inv_k).astype(out_dtype)

        if pad > 0:
            x_first = f32(x[..., 0:1, :])
            x_last = f32(x[..., L - 1:L, :])

            # ---- front band: rows t in [0, pad) ----
            # window_sum[t] = (pad - t) * x[0] + sum(x[0 : t + k - pad])
            run = f32(x[..., 0:1, :])
            for q in range(1, k - pad):
                run = run + f32(x[..., q:q + 1, :])
            for t in range(pad):
                row = run + jnp.float32(pad - t) * x_first
                o_ref[..., t:t + 1, :] = (row * inv_k).astype(out_dtype)
                if t + 1 < pad:
                    nxt = k - pad + t
                    run = run + f32(x[..., nxt:nxt + 1, :])

            # ---- back band: rows t = T - pad + u, u in [0, pad) ----
            # window_sum[t] = (u + 1) * x[L-1] + sum(x[L - k + 1 + u : L])
            run = f32(x[..., L - 1:L, :])
            for q in range(1, k - pad):
                run = run + f32(x[..., L - 1 - q:L - q, :])
            for u in range(pad - 1, -1, -1):
                row = run + jnp.float32(u + 1) * x_last
                t = T - pad + u
                o_ref[..., t:t + 1, :] = (row * inv_k).astype(out_dtype)
                if u > 0:
                    nxt = L - k + u
                    run = run + f32(x[..., nxt:nxt + 1, :])
    else:
        # Very short sequences (L < kernel_size - 1): every window is dominated by the
        # replicated boundary rows.  T and L are tiny, so fully static per-row clamped
        # sums are cheap and keep the main path branch-free.
        for t in range(T):
            row = None
            for j in range(k):
                q = min(max(t + j - pad, 0), L - 1)
                v = f32(x[..., q:q + 1, :])
                row = v if row is None else row + v
            o_ref[..., t:t + 1, :] = (row * inv_k).astype(out_dtype)


def _block_bytes_per_col(L: int, T: int, itemsize: int) -> int:
    # Double-buffered input + output columns plus a conservative allowance for the
    # f32 intermediates Mosaic may materialize for the unrolled add chain.
    return 2 * L * itemsize + 2 * T * itemsize + 3 * max(L, T) * 4


def moving_avg(x: jnp.ndarray, kernel_size: int, stride: int,
               *, target_block_bytes: int = 4 * _MIB) -> jnp.ndarray:
    """Pallas TPU forward of the PyTorch `moving_avg` module.

    x: (B, L, C).  Returns (B, L_out, C) with
    L_out = (L + 2*((kernel_size-1)//2) - kernel_size) // stride + 1.
    """
    assert x.ndim == 3, "expected (batch, seq_len, channels)"
    B, L, C = map(int, x.shape)
    k = int(kernel_size)
    s = int(stride)
    assert k >= 1 and s >= 1
    pad = (k - 1) // 2
    T = L + 2 * pad - k + 1                      # stride-1 window count
    assert T >= 1, "kernel_size too large for this sequence length"

    itemsize = jnp.dtype(x.dtype).itemsize
    kernel = functools.partial(_moving_avg_kernel, kernel_size=k, pad=pad, seq_len=L)
    per_col = _block_bytes_per_col(L, T, itemsize)
    block_budget = 16 * _MIB                     # live working set fits every generation's VMEM

    if C >= 128:
        # Channels already lane-dense: keep (B, L, C), grid over batch blocks.
        per_batch = per_col * C
        bt = max(1, min(B,
                        target_block_bytes // max(L * C * itemsize, 1),
                        block_budget // max(per_batch, 1)))
        grid = (pl.cdiv(B, bt),)
        est_vmem = bt * per_batch
        y_s1 = pl.pallas_call(
            kernel,
            out_shape=jax.ShapeDtypeStruct((B, T, C), x.dtype),
            grid=grid,
            in_specs=[pl.BlockSpec((bt, L, C), lambda i: (i, 0, 0))],
            out_specs=pl.BlockSpec((bt, T, C), lambda i: (i, 0, 0)),
            compiler_params=pltpu.CompilerParams(
                dimension_semantics=("parallel",),
                vmem_limit_bytes=int(min(48 * _MIB, max(32 * _MIB, 2 * est_vmem))),
            ),
        )(x)
    else:
        # Small channel count: fold batch into the lane axis, (B, L, C) -> (L, B*C), so
        # every vector op runs lane-dense (layout plumbing only; the kernel is unchanged).
        N = B * C
        xt = jnp.transpose(x, (1, 0, 2)).reshape(L, N)
        if N <= 128:
            nb = N
        else:
            nb = min(target_block_bytes // max(L * itemsize, 1),
                     block_budget // max(per_col, 1))
            nb = max(128, (nb // 128) * 128)
            nb = min(nb, ((N + 127) // 128) * 128)
        grid = (pl.cdiv(N, nb),)
        est_vmem = nb * per_col
        yt = pl.pallas_call(
            kernel,
            out_shape=jax.ShapeDtypeStruct((T, N), x.dtype),
            grid=grid,
            in_specs=[pl.BlockSpec((L, nb), lambda i: (0, i))],
            out_specs=pl.BlockSpec((T, nb), lambda i: (0, i)),
            compiler_params=pltpu.CompilerParams(
                dimension_semantics=("parallel",),
                vmem_limit_bytes=int(min(48 * _MIB, max(32 * _MIB, 2 * est_vmem))),
            ),
        )(xt)
        y_s1 = jnp.transpose(yt.reshape(T, B, C), (1, 0, 2))

    if s == 1:
        return y_s1
    # AvgPool1d with stride s keeps every s-th stride-1 window start.  Rare path for this
    # module; kept wrapper-side to avoid strided in-kernel stores.
    return y_s1[:, ::s, :]


def _moving_avg_ref(x, kernel_size, stride):
    """Pure-JAX reference mirroring the PyTorch forward."""
    pad = (kernel_size - 1) // 2
    front = jnp.repeat(x[:, 0:1, :], pad, axis=1)
    end = jnp.repeat(x[:, -1:, :], pad, axis=1)
    xp = jnp.concatenate([front, x, end], axis=1)
    L_out = (xp.shape[1] - kernel_size) // stride + 1
    cols = [xp[:, t * stride:t * stride + kernel_size, :].mean(axis=1)
            for t in range(L_out)]
    return jnp.stack(cols, axis=1)


def _check(x, kernel_size, stride, name):
    out = jax.block_until_ready(moving_avg(x, kernel_size, stride))
    ref = _moving_avg_ref(x, kernel_size, stride)
    assert out.shape == ref.shape, (name, out.shape, ref.shape)
    assert jnp.allclose(out, ref, atol=1e-5, rtol=1e-5), f"mismatch vs reference: {name}"


if __name__ == "__main__":
    key0, key1 = jax.random.split(jax.random.PRNGKey(0))
    # Small shapes consistent with the module: batch=2, seq=16, channels=32 / 128.
    x_small = jax.random.normal(key0, (2, 16, 32), dtype=jnp.float32)   # lane-dense (L, B*C) path
    x_wide = jax.random.normal(key1, (2, 16, 128), dtype=jnp.float32)   # (B, L, C) batch-grid path

    _check(x_small, 5, 1, "k=5 s=1 (odd kernel, stride 1, C<128)")
    _check(x_small, 4, 2, "k=4 s=2 (even kernel, strided pooling)")
    _check(x_wide, 7, 1, "k=7 s=1 (C=128, no-transpose path)")
    _check(x_small[:, :3, :], 7, 1, "k=7 s=1 on L=3 (short-sequence fallback)")

    print("KERNEL_OK")
</pallas_src>

<mosaic_0001>
module attributes {stable_mosaic.version = 11 : i64} {
  func.func @_moving_avg_kernel(%arg0: i32, %arg1: memref<16x64xf32, #tpu.memory_space<vmem>>, %arg2: memref<16x64xf32, #tpu.memory_space<vmem>>) attributes {dimension_semantics = [#tpu.dimension_semantics<parallel>], iteration_bounds = array<i64: 1>, scalar_prefetch = 0 : i64, scratch_operands = 0 : i64, tpu.core_type = #tpu.core_type<tc>, window_params = [{transform_indices = @transform_0, window_bounds = array<i64: 16, 64>}, {transform_indices = @transform_1, window_bounds = array<i64: 16, 64>}]} {
    %c0 = arith.constant 0 : index
    %c0_0 = arith.constant 0 : index
    %0 = vector.load %arg1[%c0, %c0_0] : memref<16x64xf32, #tpu.memory_space<vmem>>, vector<16x64xf32>
    %1 = vector.extract_strided_slice %0 {offsets = [0, 0], sizes = [12, 64], strides = [1, 1]} : vector<16x64xf32> to vector<12x64xf32>
    %2 = vector.extract_strided_slice %0 {offsets = [1, 0], sizes = [12, 64], strides = [1, 1]} : vector<16x64xf32> to vector<12x64xf32>
    %3 = arith.addf %1, %2 : vector<12x64xf32>
    %4 = vector.extract_strided_slice %0 {offsets = [2, 0], sizes = [12, 64], strides = [1, 1]} : vector<16x64xf32> to vector<12x64xf32>
    %5 = arith.addf %3, %4 : vector<12x64xf32>
    %6 = vector.extract_strided_slice %0 {offsets = [3, 0], sizes = [12, 64], strides = [1, 1]} : vector<16x64xf32> to vector<12x64xf32>
    %7 = arith.addf %5, %6 : vector<12x64xf32>
    %8 = vector.extract_strided_slice %0 {offsets = [4, 0], sizes = [12, 64], strides = [1, 1]} : vector<16x64xf32> to vector<12x64xf32>
    %9 = arith.addf %7, %8 : vector<12x64xf32>
    %cst = arith.constant 2.000000e-01 : f32
    %10 = vector.broadcast %cst : f32 to vector<12x64xf32>
    %11 = arith.mulf %9, %10 : vector<12x64xf32>
    %c2 = arith.constant 2 : index
    %c0_1 = arith.constant 0 : index
    %12 = vector.load %arg2[%c2, %c0_1] : memref<16x64xf32, #tpu.memory_space<vmem>>, vector<12x64xf32>
    tpu.vector_store %arg2[%c2, %c0_1], %11 {strides = array<i32>} : memref<16x64xf32, #tpu.memory_space<vmem>>, vector<12x64xf32>,
    %13 = vector.extract_strided_slice %0 {offsets = [0, 0], sizes = [1, 64], strides = [1, 1]} : vector<16x64xf32> to vector<1x64xf32>
    %14 = vector.extract_strided_slice %0 {offsets = [15, 0], sizes = [1, 64], strides = [1, 1]} : vector<16x64xf32> to vector<1x64xf32>
    %15 = vector.extract_strided_slice %0 {offsets = [0, 0], sizes = [1, 64], strides = [1, 1]} : vector<16x64xf32> to vector<1x64xf32>
    %16 = vector.extract_strided_slice %0 {offsets = [1, 0], sizes = [1, 64], strides = [1, 1]} : vector<16x64xf32> to vector<1x64xf32>
    %17 = arith.addf %15, %16 : vector<1x64xf32>
    %18 = vector.extract_strided_slice %0 {offsets = [2, 0], sizes = [1, 64], strides = [1, 1]} : vector<16x64xf32> to vector<1x64xf32>
    %19 = arith.addf %17, %18 : vector<1x64xf32>
    %cst_2 = arith.constant 2.000000e+00 : f32
    %20 = vector.broadcast %cst_2 : f32 to vector<1x64xf32>
    %21 = arith.mulf %20, %13 : vector<1x64xf32>
    %22 = arith.addf %19, %21 : vector<1x64xf32>
    %cst_3 = arith.constant 2.000000e-01 : f32
    %23 = vector.broadcast %cst_3 : f32 to vector<1x64xf32>
    %24 = arith.mulf %22, %23 : vector<1x64xf32>
    %c0_4 = arith.constant 0 : index
    %c0_5 = arith.constant 0 : index
    %25 = vector.load %arg2[%c0_4, %c0_5] : memref<16x64xf32, #tpu.memory_space<vmem>>, vector<1x64xf32>
    tpu.vector_store %arg2[%c0_4, %c0_5], %24 {strides = array<i32>} : memref<16x64xf32, #tpu.memory_space<vmem>>, vector<1x64xf32>,
    %26 = vector.extract_strided_slice %0 {offsets = [3, 0], sizes = [1, 64], strides = [1, 1]} : vector<16x64xf32> to vector<1x64xf32>
    %27 = arith.addf %19, %26 : vector<1x64xf32>
    %cst_6 = arith.constant 1.000000e+00 : f32
    %28 = vector.broadcast %cst_6 : f32 to vector<1x64xf32>
    %29 = arith.mulf %28, %13 : vector<1x64xf32>
    %30 = arith.addf %27, %29 : vector<1x64xf32>
    %cst_7 = arith.constant 2.000000e-01 : f32
    %31 = vector.broadcast %cst_7 : f32 to vector<1x64xf32>
    %32 = arith.mulf %30, %31 : vector<1x64xf32>
    %c1 = arith.constant 1 : index
    %c0_8 = arith.constant 0 : index
    %33 = vector.load %arg2[%c1, %c0_8] : memref<16x64xf32, #tpu.memory_space<vmem>>, vector<1x64xf32>
    tpu.vector_store %arg2[%c1, %c0_8], %32 {strides = array<i32>} : memref<16x64xf32, #tpu.memory_space<vmem>>, vector<1x64xf32>,
    %34 = vector.extract_strided_slice %0 {offsets = [15, 0], sizes = [1, 64], strides = [1, 1]} : vector<16x64xf32> to vector<1x64xf32>
    %35 = vector.extract_strided_slice %0 {offsets = [14, 0], sizes = [1, 64], strides = [1, 1]} : vector<16x64xf32> to vector<1x64xf32>
    %36 = arith.addf %34, %35 : vector<1x64xf32>
    %37 = vector.extract_strided_slice %0 {offsets = [13, 0], sizes = [1, 64], strides = [1, 1]} : vector<16x64xf32> to vector<1x64xf32>
    %38 = arith.addf %36, %37 : vector<1x64xf32>
    %cst_9 = arith.constant 2.000000e+00 : f32
    %39 = vector.broadcast %cst_9 : f32 to vector<1x64xf32>
    %40 = arith.mulf %39, %14 : vector<1x64xf32>
    %41 = arith.addf %38, %40 : vector<1x64xf32>
    %cst_10 = arith.constant 2.000000e-01 : f32
    %42 = vector.broadcast %cst_10 : f32 to vector<1x64xf32>
    %43 = arith.mulf %41, %42 : vector<1x64xf32>
    %c15 = arith.constant 15 : index
    %c0_11 = arith.constant 0 : index
    %44 = vector.load %arg2[%c15, %c0_11] : memref<16x64xf32, #tpu.memory_space<vmem>>, vector<1x64xf32>
    tpu.vector_store %arg2[%c15, %c0_11], %43 {strides = array<i32>} : memref<16x64xf32, #tpu.memory_space<vmem>>, vector<1x64xf32>,
    %45 = vector.extract_strided_slice %0 {offsets = [12, 0], sizes = [1, 64], strides = [1, 1]} : vector<16x64xf32> to vector<1x64xf32>
    %46 = arith.addf %38, %45 : vector<1x64xf32>
    %cst_12 = arith.constant 1.000000e+00 : f32
    %47 = vector.broadcast %cst_12 : f32 to vector<1x64xf32>
    %48 = arith.mulf %47, %14 : vector<1x64xf32>
    %49 = arith.addf %46, %48 : vector<1x64xf32>
    %cst_13 = arith.constant 2.000000e-01 : f32
    %50 = vector.broadcast %cst_13 : f32 to vector<1x64xf32>
    %51 = arith.mulf %49, %50 : vector<1x64xf32>
    %c14 = arith.constant 14 : index
    %c0_14 = arith.constant 0 : index
    %52 = vector.load %arg2[%c14, %c0_14] : memref<16x64xf32, #tpu.memory_space<vmem>>, vector<1x64xf32>
    tpu.vector_store %arg2[%c14, %c0_14], %51 {strides = array<i32>} : memref<16x64xf32, #tpu.memory_space<vmem>>, vector<1x64xf32>,
    return
  }
  func.func @transform_0(%arg0: i32) -> (i32, i32) {
    %c0_i32 = arith.constant 0 : i32
    %c0_i32_0 = arith.constant 0 : i32
    return %c0_i32, %arg0 : i32, i32
  }
  func.func @transform_1(%arg0: i32) -> (i32, i32) {
    %c0_i32 = arith.constant 0 : i32
    %c0_i32_0 = arith.constant 0 : i32
    return %c0_i32, %arg0 : i32, i32
  }
}

</mosaic_0001>

<llo_original>
// kernel: tpu_custom_call.1
$region0: #{tpu_custom_call.1}
  #allocation0 [shape = 'u32[]', space=smem, size = 0x4, offset = 0x4, fixed_abs, tag = 'smem constant byte address 0x4 - core index']
  #allocation1 [shape = 'u32[144,128]{1,0:T(1,128)}', space=vmem, size = 0x12000, scoped, tag = 'internal scratch']
  %s0 = inlined_call_operand.hbm [shape: f32[16,64], index: 0, kind: input, shape index: {}]
  %s1 = inlined_call_operand.hbm [shape: f32[16,64], index: 1, kind: output, shape index: {}]
  %s2 = sld [smem:[#allocation0]]
  $region18: #{tpu_custom_call.1} parent=0
    _
  %s4 = ssub.s32 1, %s2
  %s5 = scalar_select 0, %s4, %s2
  $region1: #{tpu_custom_call.1} parent=0
    #allocation2 [shape = 'u8[8192]{0}', space=vmem, size = 0x2000, scoped, tag = 'input window, operand 0, single buffered']
    #allocation3 [shape = 's32[1]{0}', space=sflag, size = 0x4, scoped, tag = 'scoped memory for tpu_custom_call.1']
    #allocation4 [shape = 's32[1]{0}', space=sflag, size = 0x4, scoped, tag = 'scoped memory for tpu_custom_call.1']
    #allocation5 [shape = 'u8[8192]{0}', space=vmem, size = 0x2000, scoped, tag = 'output window, operand 0, single buffered']
    %6 = vsyncpa [#allocation3], 0
    %7 = vsyncpa [#allocation4], 0
    // Predicated region
    $region2: #{tpu_custom_call.1} parent=1 // pred_check
      _
    $region3: #{tpu_custom_call.1} parent=1 // pred_check_branch
      %9 = sbr.rel (0) target = $region5
    $region4: #{tpu_custom_call.1} parent=1 // pred_region
      %s11 = ssub.s32 256, 256
      %12 = vsyncadd [#allocation3], %s11
      %s13 = sshll.u32 [#allocation2], 4
      %s14 = int_to_ptr.vmem [resolvable:$true] %s13
      %19 = dma.hbm_to_vmem [thread:$0]  %s0, 256, %s14, [#allocation3], 128, 128, 8
    $region5: #{tpu_custom_call.1} parent=1 // pred_fallthru
      _
    // Predicated region
    $region6: #{tpu_custom_call.1} parent=1 // pred_check
      _
    $region7: #{tpu_custom_call.1} parent=1 // pred_check_branch
      %21 = sbr.rel (0) target = $region9
    $region8: #{tpu_custom_call.1} parent=1 // pred_region
      %22 = dma.done [#allocation3], 256
    $region9: #{tpu_custom_call.1} parent=1 // pred_fallthru
      _
    %v23 = vld [vmem:[#allocation2] sm:$0xff]
    %v24 = vld [vmem:[#allocation2 + $0x8] sm:$0xff]
    %vm27 = vcmask 1046528
    %v28 = vrot.slane %v23, 1
    %v29 = vrot.slane %v24, 1
    %v30 = vsel %vm27, %v28, %v29
    %v33 = vadd.f32 %v23, %v30
    %v34 = vadd.f32 %v24, %v29
    %vm35 = vcmask 1045504
    %v36 = vrot.slane %v23, 2
    %v37 = vrot.slane %v24, 2
    %v38 = vsel %vm35, %v36, %v37
    %v41 = vadd.f32 %v33, %v38
    %v42 = vadd.f32 %v34, %v37
    %vm43 = vcmask 1044480
    %v44 = vrot.slane %v23, 3
    %v45 = vrot.slane %v24, 3
    %v46 = vsel %vm43, %v44, %v45
    %v49 = vadd.f32 %v41, %v46
    %v50 = vadd.f32 %v42, %v45
    %vm51 = vcmask 1043456
    %v52 = vrot.slane %v23, 4
    %v53 = vrot.slane %v24, 4
    %v54 = vsel %vm51, %v52, %v53
    %v57 = vadd.f32 %v49, %v54
    %v58 = vadd.f32 %v50, %v53
    %v59 = vmul.f32 %v57, 0.2
    %v60 = vmul.f32 %v58, 0.2
    %vm61 = vcmask 523264
    %62 = vst.msk [vmem:[#allocation5 + $0x2] sm:$0xff] %vm61, %v59
    %vm63 = vcmask 519168
    %64 = vst.msk [vmem:[#allocation5 + $0xa] sm:$0xf] %vm63, %v60
    %v66 = vadd.f32 %v23, %v28
    %v68 = vadd.f32 %v66, %v36
    %v69 = vmul.f32 %v23, 2.0
    %v70 = vadd.f32 %v68, %v69
    %v71 = vmul.f32 %v70, 0.2
    %vm72 = vcmask 516096
    %73 = vst.msk [vmem:[#allocation5] sm:$0x1] %vm72, %v71
    %v75 = vadd.f32 %v68, %v44
    %v76 = vadd.f32 %v75, %v23
    %v77 = vmul.f32 %v76, 0.2
    %78 = vst.msk [vmem:[#allocation5 + $0x1] sm:$0x1] %vm72, %v77
    %v79 = vrot.slane %v24, 7
    %v81 = vadd.f32 %v24, %v79
    %v82 = vrot.slane %v24, 6
    %v84 = vadd.f32 %v81, %v82
    %v85 = vmul.f32 %v24, 2.0
    %v86 = vadd.f32 %v84, %v85
    %v87 = vmul.f32 %v86, 0.2
    %vm88 = vcmask 523271
    %89 = vst.msk [vmem:[#allocation5 + $0x8] sm:$0x80] %vm88, %v87
    %v90 = vrot.slane %v24, 5
    %v92 = vadd.f32 %v84, %v90
    %v93 = vadd.f32 %v92, %v24
    %v94 = vmul.f32 %v93, 0.2
    %95 = vst.msk [vmem:[#allocation5 + $0x7] sm:$0x80] %vm88, %v94
    // Predicated region
    $region10: #{tpu_custom_call.1} parent=1 // pred_check
      _
    $region11: #{tpu_custom_call.1} parent=1 // pred_check_branch
      %97 = sbr.rel (0) target = $region13
    $region12: #{tpu_custom_call.1} parent=1 // pred_region
      %s99 = ssub.s32 256, 256
      %100 = vsyncadd [#allocation4], %s99
      %s101 = sshll.u32 [#allocation5], 4
      %s102 = int_to_ptr.vmem [resolvable:$true] %s101
      %107 = dma.vmem_to_hbm [thread:$0]  %s102, 256, %s1, [#allocation4], 128, 128, 8
    $region13: #{tpu_custom_call.1} parent=1 // pred_fallthru
      _
    // Predicated region
    $region14: #{tpu_custom_call.1} parent=1 // pred_check
      _
    $region15: #{tpu_custom_call.1} parent=1 // pred_check_branch
      %109 = sbr.rel (0) target = $region17
    $region16: #{tpu_custom_call.1} parent=1 // pred_region
      %110 = dma.done [#allocation4], 256
    $region17: #{tpu_custom_call.1} parent=1 // pred_fallthru
      _
    %111 = vsyncpa [#allocation3], 1
    %112 = vsyncpa [#allocation4], 1

</llo_original>
